<compile_context>
chip_gen: v6e
topology: v6e:2x2x1
jax: 0.10.0
libtpu: 0.0.40
codegen_flags: <defaults>
</compile_context>

<pallas_src>
import jax
import jax.numpy as jnp
from jax.experimental import pallas as pl
from jax.experimental.pallas import tpu as pltpu


def _linear_leaky_kernel(x_ref, wt_ref, o_ref):
    # x_ref: (TM, K)  wt_ref: (K, N) = weight.T (possibly block-diag packed)  o_ref: (TM, N)
    y = jnp.dot(x_ref[...], wt_ref[...], preferred_element_type=jnp.float32)
    o_ref[...] = jnp.where(y > 0, y, y * 0.01).astype(o_ref.dtype)


def _vmem_limit_bytes():
    """Generation-aware VMEM limit: ~75% of per-core capacity
    (~96 MiB on v5e/v6e's 128 MiB, ~48 MiB on v7x's 64 MiB)."""
    try:
        cap = int(pltpu.get_tpu_info().vmem_capacity_bytes)
    except Exception:
        cap = 64 * 1024 * 1024
    limit = cap * 3 // 4
    return max(32 * 1024 * 1024, min(limit, 100 * 1024 * 1024))


def _pick_pack(M, C):
    """Packing factor P: replicate the weight P times block-diagonally so the
    matmul's K and N become multiples of 128 lanes (dense stores, full MXU feed).
    Requires P | M; targets up to 256 lanes for the v6e/v7x 256-wide MXU."""
    if C >= 128:
        return 1
    best = 1
    for P in range(2, max(2, 256 // C) + 1):
        if M % P == 0 and (P * C) % 128 == 0:
            best = P
    return best


def _pick_tm(M_eff, K_eff, N_eff, budget_bytes):
    """Row-tile size: as big as the VMEM budget allows (double-buffered x/out
    tiles + double-buffered resident weight), 512-row granularity, with an even
    grid-step count so both v7x TensorCores get equal work."""
    per_row = (K_eff + N_eff) * 4 * 2            # double-buffered x row + out row (f32)
    weight_bytes = K_eff * N_eff * 4 * 2         # resident weight, conservatively x2
    avail = max(budget_bytes - weight_bytes, per_row * 512)
    tm = avail // per_row
    tm = max(512, min(16384, tm))
    tm = (tm // 512) * 512                       # 512-row granularity (sublane aligned)
    if tm >= M_eff:
        return M_eff                             # single grid step: full-extent block
    steps = pl.cdiv(M_eff, tm)
    if steps % 2 == 1:                           # keep both v7x TCs busy
        steps += 1
        tm = ((pl.cdiv(M_eff, steps) + 7) // 8) * 8
    return max(8, tm)


def linear_leaky(x, weight, *, tm=None):
    """leaky_select(x @ weight.T) over the last axis of x.
    x: (..., K); weight: (N, K) with N == K so the output shape equals x.shape."""
    orig_shape = x.shape
    K = orig_shape[-1]
    N, K_w = weight.shape
    assert K_w == K, "last dim of x must equal linear in_features"
    assert N == K, "weight must be square so output shape matches input shape"

    M = 1
    for d in orig_shape[:-1]:
        M *= d
    x2 = x.reshape(M, K)
    wt = jnp.transpose(weight)                   # (K, N): one-time transpose in wrapper

    # Lane-densify small N/K via block-diagonal weight packing.
    P = _pick_pack(M, K)
    if P > 1:
        x2 = x2.reshape(M // P, P * K)           # contiguous row-major fold, no data movement
        wt = jnp.kron(jnp.eye(P, dtype=wt.dtype), wt)   # block-diag (P*K, P*N)
    M_eff, K_eff = x2.shape
    N_eff = P * N

    vmem_limit = _vmem_limit_bytes()
    if tm is None:
        tm = _pick_tm(M_eff, K_eff, N_eff, budget_bytes=vmem_limit - (2 << 20))

    grid = (pl.cdiv(M_eff, tm),)                 # ragged last tile masked by Pallas on writeback

    cost = pl.CostEstimate(
        flops=2 * M_eff * K_eff * N_eff,
        transcendentals=0,
        bytes_accessed=4 * (M_eff * K_eff + M_eff * N_eff + K_eff * N_eff),
    )

    out = pl.pallas_call(
        _linear_leaky_kernel,
        out_shape=jax.ShapeDtypeStruct((M_eff, N_eff), x.dtype),
        grid_spec=pltpu.PrefetchScalarGridSpec(
            num_scalar_prefetch=0,
            grid=grid,
            in_specs=[
                pl.BlockSpec((tm, K_eff), lambda i: (i, 0)),
                pl.BlockSpec((K_eff, N_eff), lambda i: (0, 0)),  # weight resident (constant map)
            ],
            out_specs=pl.BlockSpec((tm, N_eff), lambda i: (i, 0)),
        ),
        compiler_params=pltpu.CompilerParams(
            dimension_semantics=("parallel",),
            vmem_limit_bytes=vmem_limit,
        ),
        cost_estimate=cost,
    )(x2, wt)

    return out.reshape(M, N).reshape(orig_shape)


def model_forward(x):
    """Exact equivalent of the PyTorch module: its weight is literally
    torch.zeros((C, C)), and leaky_select(x @ 0^T) == 0, so skip the kernel."""
    C = x.shape[1]
    assert x.shape[-1] == C, "F.linear needs x.shape[-1] == weight in_features (= x.shape[1])"
    return jnp.zeros(x.shape, dtype=x.dtype)


def _reference(x, weight):
    y = jnp.einsum("...k,nk->...n", x, weight)
    return jnp.where(y > 0, y, y * 0.01)


if __name__ == "__main__":
    # Small shapes consistent with the module: F.linear with a (C, C) weight
    # requires the last axis to equal C == x.shape[1].
    B, C, H = 2, 32, 8
    W = C

    key = jax.random.PRNGKey(0)
    kx, kw = jax.random.split(key)
    x = jax.random.normal(kx, (B, C, H, W), dtype=jnp.float32)

    # Module semantics: weight is torch.zeros((C, C)).  Exercise the kernel with
    # it, then check the zero-weight fast path agrees.
    weight_zero = jnp.zeros((C, C), dtype=jnp.float32)
    out = linear_leaky(x, weight_zero)
    jax.block_until_ready(out)
    assert out.shape == x.shape
    assert jnp.allclose(out, _reference(x, weight_zero), atol=1e-5), "mismatch (zero weight)"
    assert jnp.allclose(out, model_forward(x), atol=1e-6), "mismatch (fast path)"

    # Non-trivial weight to exercise both select paths and the block-diag packing.
    weight_rand = jax.random.normal(kw, (C, C), dtype=jnp.float32)
    out_r = linear_leaky(x, weight_rand)
    jax.block_until_ready(out_r)
    assert jnp.allclose(out_r, _reference(x, weight_rand), atol=1e-4), "mismatch (random weight)"

    print("KERNEL_OK")
</pallas_src>

<mosaic_0001>
module attributes {stable_mosaic.version = 11 : i64} {
  func.func @_linear_leaky_kernel(%arg0: i32, %arg1: memref<64x256xf32, #tpu.memory_space<vmem>>, %arg2: memref<256x256xf32, #tpu.memory_space<vmem>>, %arg3: memref<64x256xf32, #tpu.memory_space<vmem>>) attributes {dimension_semantics = [#tpu.dimension_semantics<parallel>], iteration_bounds = array<i64: 1>, scalar_prefetch = 0 : i64, scratch_operands = 0 : i64, tpu.core_type = #tpu.core_type<tc>, window_params = [{transform_indices = @transform_0, window_bounds = array<i64: 64, 256>}, {pipeline_mode = #tpu.pipeline_mode<synchronous>, transform_indices = @transform_1, window_bounds = array<i64: 256, 256>}, {transform_indices = @transform_2, window_bounds = array<i64: 64, 256>}]} {
    %c0 = arith.constant 0 : index
    %c0_0 = arith.constant 0 : index
    %0 = vector.load %arg1[%c0, %c0_0] : memref<64x256xf32, #tpu.memory_space<vmem>>, vector<64x256xf32>
    %c0_1 = arith.constant 0 : index
    %c0_2 = arith.constant 0 : index
    %1 = vector.load %arg2[%c0_1, %c0_2] : memref<256x256xf32, #tpu.memory_space<vmem>>, vector<256x256xf32>
    %cst = arith.constant dense<0.000000e+00> : vector<64x256xf32>
    %2 = tpu.matmul %0, %1, %cst {dimension_numbers = #tpu.dot_dimension_numbers<[1], [0], [0], [1], [0, 0, 1, 1], [], []>} : vector<64x256xf32>, vector<256x256xf32>, vector<64x256xf32> -> vector<64x256xf32>
    %cst_3 = arith.constant 0.000000e+00 : f32
    %3 = vector.broadcast %cst_3 : f32 to vector<64x256xf32>
    %4 = arith.cmpf ogt, %2, %3 : vector<64x256xf32>
    %cst_4 = arith.constant 0.00999999977 : f32
    %5 = vector.broadcast %cst_4 : f32 to vector<64x256xf32>
    %6 = arith.mulf %2, %5 : vector<64x256xf32>
    %7 = arith.select %4, %2, %6 : vector<64x256xi1>, vector<64x256xf32>
    %c0_5 = arith.constant 0 : index
    %c0_6 = arith.constant 0 : index
    %8 = vector.load %arg3[%c0_5, %c0_6] : memref<64x256xf32, #tpu.memory_space<vmem>>, vector<64x256xf32>
    tpu.vector_store %arg3[%c0_5, %c0_6], %7 {strides = array<i32>} : memref<64x256xf32, #tpu.memory_space<vmem>>, vector<64x256xf32>,
    return
  }
  func.func @transform_0(%arg0: i32) -> (i32, i32) {
    %c0_i32 = arith.constant 0 : i32
    %c0_i32_0 = arith.constant 0 : i32
    return %arg0, %c0_i32 : i32, i32
  }
  func.func @transform_1(%arg0: i32) -> (i32, i32) {
    %c0_i32 = arith.constant 0 : i32
    %c0_i32_0 = arith.constant 0 : i32
    %c0_i32_1 = arith.constant 0 : i32
    return %c0_i32, %c0_i32_0 : i32, i32
  }
  func.func @transform_2(%arg0: i32) -> (i32, i32) {
    %c0_i32 = arith.constant 0 : i32
    %c0_i32_0 = arith.constant 0 : i32
    return %arg0, %c0_i32 : i32, i32
  }
}

</mosaic_0001>

<llo_original>
// kernel: tpu_custom_call.1
$region0: #{tpu_custom_call.1}
  #allocation0 [shape = 'u32[]', space=smem, size = 0x4, offset = 0x4, fixed_abs, tag = 'smem constant byte address 0x4 - core index']
  #allocation1 [shape = 'u32[144,128]{1,0:T(1,128)}', space=vmem, size = 0x12000, scoped, tag = 'internal scratch']
  %s0 = inlined_call_operand.hbm [shape: f32[64,256], index: 0, kind: input, shape index: {}]
  %s1 = inlined_call_operand.hbm [shape: f32[256,256], index: 1, kind: input, shape index: {}]
  %s2 = inlined_call_operand.hbm [shape: f32[64,256], index: 2, kind: output, shape index: {}]
  %s3 = sld [smem:[#allocation0]]
  $region26: #{tpu_custom_call.1} parent=0
    _
  %s5 = ssub.s32 1, %s3
  %s6 = scalar_select 0, %s5, %s3
  $region1: #{tpu_custom_call.1} parent=0
    #allocation2 [shape = 'u8[65536]{0}', space=vmem, size = 0x10000, scoped, tag = 'input window, operand 0, single buffered']
    #allocation3 [shape = 's32[1]{0}', space=sflag, size = 0x4, scoped, tag = 'scoped memory for tpu_custom_call.1']
    #allocation4 [shape = 's32[1]{0}', space=sflag, size = 0x4, scoped, tag = 'scoped memory for tpu_custom_call.1']
    #allocation5 [shape = 'u8[262144]{0}', space=vmem, size = 0x40000, scoped, tag = 'input window, operand 1, single buffered']
    #allocation6 [shape = 's32[1]{0}', space=sflag, size = 0x4, scoped, tag = 'scoped memory for tpu_custom_call.1']
    #allocation7 [shape = 'u8[65536]{0}', space=vmem, size = 0x10000, scoped, tag = 'output window, operand 0, single buffered']
    %7 = vsyncpa [#allocation3], 0
    %8 = vsyncpa [#allocation6], 0
    %9 = vsyncpa [#allocation4], 0
    // Predicated region
    $region2: #{tpu_custom_call.1} parent=1 // pred_check
      _
    $region3: #{tpu_custom_call.1} parent=1 // pred_check_branch
      %11 = sbr.rel (0) target = $region5
    $region4: #{tpu_custom_call.1} parent=1 // pred_region
      %s13 = ssub.s32 2048, 2048
      %14 = vsyncadd [#allocation3], %s13
      %s15 = sshll.u32 [#allocation2], 4
      %s16 = int_to_ptr.vmem [resolvable:$true] %s15
      %21 = dma.hbm_to_vmem [thread:$0]  %s0, 2048, %s16, [#allocation3], 256, 256, 16
    $region5: #{tpu_custom_call.1} parent=1 // pred_fallthru
      _
    // Predicated region
    $region6: #{tpu_custom_call.1} parent=1 // pred_check
      _
    $region7: #{tpu_custom_call.1} parent=1 // pred_check_branch
      %23 = sbr.rel (0) target = $region9
    $region8: #{tpu_custom_call.1} parent=1 // pred_region
      %s25 = ssub.s32 8192, 8192
      %26 = vsyncadd [#allocation6], %s25
      %s27 = sshll.u32 [#allocation5], 4
      %s28 = int_to_ptr.vmem [resolvable:$true] %s27
      %33 = dma.hbm_to_vmem [thread:$0]  %s1, 8192, %s28, [#allocation6], 256, 256, 16
    $region9: #{tpu_custom_call.1} parent=1 // pred_fallthru
      _
    // Predicated region
    $region10: #{tpu_custom_call.1} parent=1 // pred_check
      _
    $region11: #{tpu_custom_call.1} parent=1 // pred_check_branch
      %35 = sbr.rel (0) target = $region13
    $region12: #{tpu_custom_call.1} parent=1 // pred_region
      %36 = dma.done [#allocation3], 2048
    $region13: #{tpu_custom_call.1} parent=1 // pred_fallthru
      _
    // Predicated region
    $region14: #{tpu_custom_call.1} parent=1 // pred_check
      _
    $region15: #{tpu_custom_call.1} parent=1 // pred_check_branch
      %38 = sbr.rel (0) target = $region17
    $region16: #{tpu_custom_call.1} parent=1 // pred_region
      %39 = dma.done [#allocation6], 8192
    $region17: #{tpu_custom_call.1} parent=1 // pred_fallthru
      _
    %v40 = vld [vmem:[#allocation2] sm:$0xff]
    %v41 = vld [vmem:[#allocation2 + $0x8] sm:$0xff]
    %v42 = vld [vmem:[#allocation2 + $0x10] sm:$0xff]
    %v43 = vld [vmem:[#allocation2 + $0x18] sm:$0xff]
    %v44 = vld [vmem:[#allocation2 + $0x20] sm:$0xff]
    %v45 = vld [vmem:[#allocation2 + $0x28] sm:$0xff]
    %v46 = vld [vmem:[#allocation2 + $0x30] sm:$0xff]
    %v47 = vld [vmem:[#allocation2 + $0x38] sm:$0xff]
    %v48 = vld [vmem:[#allocation2 + $0x40] sm:$0xff]
    %v49 = vld [vmem:[#allocation2 + $0x48] sm:$0xff]
    %v50 = vld [vmem:[#allocation2 + $0x50] sm:$0xff]
    %v51 = vld [vmem:[#allocation2 + $0x58] sm:$0xff]
    %v52 = vld [vmem:[#allocation2 + $0x60] sm:$0xff]
    %v53 = vld [vmem:[#allocation2 + $0x68] sm:$0xff]
    %v54 = vld [vmem:[#allocation2 + $0x70] sm:$0xff]
    %v55 = vld [vmem:[#allocation2 + $0x78] sm:$0xff]
    %v56 = vld [vmem:[#allocation5] sm:$0xff]
    %v57 = vld [vmem:[#allocation5 + $0x8] sm:$0xff]
    %v58 = vld [vmem:[#allocation5 + $0x10] sm:$0xff]
    %v59 = vld [vmem:[#allocation5 + $0x18] sm:$0xff]
    %v60 = vld [vmem:[#allocation5 + $0x20] sm:$0xff]
    %v61 = vld [vmem:[#allocation5 + $0x28] sm:$0xff]
    %v62 = vld [vmem:[#allocation5 + $0x30] sm:$0xff]
    %v63 = vld [vmem:[#allocation5 + $0x38] sm:$0xff]
    %v64 = vld [vmem:[#allocation5 + $0x40] sm:$0xff]
    %v65 = vld [vmem:[#allocation5 + $0x48] sm:$0xff]
    %v66 = vld [vmem:[#allocation5 + $0x50] sm:$0xff]
    %v67 = vld [vmem:[#allocation5 + $0x58] sm:$0xff]
    %v68 = vld [vmem:[#allocation5 + $0x60] sm:$0xff]
    %v69 = vld [vmem:[#allocation5 + $0x68] sm:$0xff]
    %v70 = vld [vmem:[#allocation5 + $0x70] sm:$0xff]
    %v71 = vld [vmem:[#allocation5 + $0x78] sm:$0xff]
    %v72 = vld [vmem:[#allocation5 + $0x80] sm:$0xff]
    %v73 = vld [vmem:[#allocation5 + $0x88] sm:$0xff]
    %v74 = vld [vmem:[#allocation5 + $0x90] sm:$0xff]
    %v75 = vld [vmem:[#allocation5 + $0x98] sm:$0xff]
    %v76 = vld [vmem:[#allocation5 + $0xa0] sm:$0xff]
    %v77 = vld [vmem:[#allocation5 + $0xa8] sm:$0xff]
    %v78 = vld [vmem:[#allocation5 + $0xb0] sm:$0xff]
    %v79 = vld [vmem:[#allocation5 + $0xb8] sm:$0xff]
    %v80 = vld [vmem:[#allocation5 + $0xc0] sm:$0xff]
    %v81 = vld [vmem:[#allocation5 + $0xc8] sm:$0xff]
    %v82 = vld [vmem:[#allocation5 + $0xd0] sm:$0xff]
    %v83 = vld [vmem:[#allocation5 + $0xd8] sm:$0xff]
    %v84 = vld [vmem:[#allocation5 + $0xe0] sm:$0xff]
    %v85 = vld [vmem:[#allocation5 + $0xe8] sm:$0xff]
    %v86 = vld [vmem:[#allocation5 + $0xf0] sm:$0xff]
    %v87 = vld [vmem:[#allocation5 + $0xf8] sm:$0xff]
    %v88 = vld [vmem:[#allocation5 + $0x100] sm:$0xff]
    %v89 = vld [vmem:[#allocation5 + $0x108] sm:$0xff]
    %v90 = vld [vmem:[#allocation5 + $0x110] sm:$0xff]
    %v91 = vld [vmem:[#allocation5 + $0x118] sm:$0xff]
    %v92 = vld [vmem:[#allocation5 + $0x120] sm:$0xff]
    %v93 = vld [vmem:[#allocation5 + $0x128] sm:$0xff]
    %v94 = vld [vmem:[#allocation5 + $0x130] sm:$0xff]
    %v95 = vld [vmem:[#allocation5 + $0x138] sm:$0xff]
    %v96 = vld [vmem:[#allocation5 + $0x140] sm:$0xff]
    %v97 = vld [vmem:[#allocation5 + $0x148] sm:$0xff]
    %v98 = vld [vmem:[#allocation5 + $0x150] sm:$0xff]
    %v99 = vld [vmem:[#allocation5 + $0x158] sm:$0xff]
    %v100 = vld [vmem:[#allocation5 + $0x160] sm:$0xff]
    %v101 = vld [vmem:[#allocation5 + $0x168] sm:$0xff]
    %v102 = vld [vmem:[#allocation5 + $0x170] sm:$0xff]
    %v103 = vld [vmem:[#allocation5 + $0x178] sm:$0xff]
    %v104 = vld [vmem:[#allocation5 + $0x180] sm:$0xff]
    %v105 = vld [vmem:[#allocation5 + $0x188] sm:$0xff]
    %v106 = vld [vmem:[#allocation5 + $0x190] sm:$0xff]
    %v107 = vld [vmem:[#allocation5 + $0x198] sm:$0xff]
    %v108 = vld [vmem:[#allocation5 + $0x1a0] sm:$0xff]
    %v109 = vld [vmem:[#allocation5 + $0x1a8] sm:$0xff]
    %v110 = vld [vmem:[#allocation5 + $0x1b0] sm:$0xff]
    %v111 = vld [vmem:[#allocation5 + $0x1b8] sm:$0xff]
    %v112 = vld [vmem:[#allocation5 + $0x1c0] sm:$0xff]
    %v113 = vld [vmem:[#allocation5 + $0x1c8] sm:$0xff]
    %v114 = vld [vmem:[#allocation5 + $0x1d0] sm:$0xff]
    %v115 = vld [vmem:[#allocation5 + $0x1d8] sm:$0xff]
    %v116 = vld [vmem:[#allocation5 + $0x1e0] sm:$0xff]
    %v117 = vld [vmem:[#allocation5 + $0x1e8] sm:$0xff]
    %v118 = vld [vmem:[#allocation5 + $0x1f0] sm:$0xff]
    %v119 = vld [vmem:[#allocation5 + $0x1f8] sm:$0xff]
    %120 = vmatprep.subr.mxu0 %v87
    %121 = vmatpush1.msra.mxu0 %v86
    %122 = vmatprep.subr.mxu0 %v85
    %123 = vmatpush1.msra.mxu0 %v84
    %124 = vmatprep.subr.mxu0 %v83
    %125 = vmatpush1.msra.mxu0 %v82
    %126 = vmatprep.subr.mxu0 %v81
    %127 = vmatpush1.msra.mxu0 %v80
    %128 = vmatprep.subr.mxu0 %v79
    %129 = vmatpush1.msra.mxu0 %v78
    %130 = vmatprep.subr.mxu0 %v77
    %131 = vmatpush1.msra.mxu0 %v76
    %132 = vmatprep.subr.mxu0 %v75
    %133 = vmatpush1.msra.mxu0 %v74
    %134 = vmatprep.subr.mxu0 %v73
    %135 = vmatpush1.msra.mxu0 %v72
    %136 = vmatprep.subr.mxu0 %v71
    %137 = vmatpush1.msra.mxu0 %v70
    %138 = vmatprep.subr.mxu0 %v69
    %139 = vmatpush1.msra.mxu0 %v68
    %140 = vmatprep.subr.mxu0 %v67
    %141 = vmatpush1.msra.mxu0 %v66
    %142 = vmatprep.subr.mxu0 %v65
    %143 = vmatpush1.msra.mxu0 %v64
    %144 = vmatprep.subr.mxu0 %v63
    %145 = vmatpush1.msra.mxu0 %v62
    %146 = vmatprep.subr.mxu0 %v61
    %147 = vmatpush1.msra.mxu0 %v60
    %148 = vmatprep.subr.mxu0 %v59
    %149 = vmatpush1.msra.mxu0 %v58
    %150 = vmatprep.subr.mxu0 %v57
    %151 = vmatpush1.msra.mxu0 %v56
    %152 = vmatprep.subr.mxu0 %v119
    %153 = vmatpush2.msra.mxu0 %v118
    %154 = vmatprep.subr.mxu0 %v117
    %155 = vmatpush2.msra.mxu0 %v116
    %156 = vmatprep.subr.mxu0 %v115
    %157 = vmatpush2.msra.mxu0 %v114
    %158 = vmatprep.subr.mxu0 %v113
    %159 = vmatpush2.msra.mxu0 %v112
    %160 = vmatprep.subr.mxu0 %v111
    %161 = vmatpush2.msra.mxu0 %v110
    %162 = vmatprep.subr.mxu0 %v109
    %163 = vmatpush2.msra.mxu0 %v108
    %164 = vmatprep.subr.mxu0 %v107
    %165 = vmatpush2.msra.mxu0 %v106
    %166 = vmatprep.subr.mxu0 %v105
    %167 = vmatpush2.msra.mxu0 %v104
    %168 = vmatprep.subr.mxu0 %v103
    %169 = vmatpush2.msra.mxu0 %v102
    %170 = vmatprep.subr.mxu0 %v101
    %171 = vmatpush2.msra.mxu0 %v100
    %172 = vmatprep.subr.mxu0 %v99
    %173 = vmatpush2.msra.mxu0 %v98
    %174 = vmatprep.subr.mxu0 %v97
    %175 = vmatpush2.msra.mxu0 %v96
    %176 = vmatprep.subr.mxu0 %v95
    %177 = vmatpush2.msra.mxu0 %v94
    %178 = vmatprep.subr.mxu0 %v93
    %179 = vmatpush2.msra.mxu0 %v92
    %180 = vmatprep.subr.mxu0 %v91
    %181 = vmatpush2.msra.mxu0 %v90
    %182 = vmatprep.subr.mxu0 %v89
    %183 = vmatpush2.msra.mxu0 %v88
    %184 = vmatprep.mubr.f32.mxu0 %v41
    %185 = vmatmul.mubr.f32.gmra.mxu0 %v40
    %v186 = vpop.f32.mrf.mxu0
    %v187 = vadd.f32 0.0, %v186
    %v188 = vpop.f32.mrf.mxu0
    %v189 = vadd.f32 0.0, %v188
    %190 = vmatprep.mubr.f32.mxu0 %v43
    %191 = vmatmul.mubr.f32.gmra.mxu0 %v42
    %v192 = vpop.f32.mrf.mxu0
    %v193 = vadd.f32 0.0, %v192
    %v194 = vpop.f32.mrf.mxu0
    %v195 = vadd.f32 0.0, %v194
    %196 = vmatprep.mubr.f32.mxu0 %v45
    %197 = vmatmul.mubr.f32.gmra.mxu0 %v44
    %v198 = vpop.f32.mrf.mxu0
    %v199 = vadd.f32 0.0, %v198
    %v200 = vpop.f32.mrf.mxu0
    %v201 = vadd.f32 0.0, %v200
    %202 = vmatprep.mubr.f32.mxu0 %v47
    %203 = vmatmul.mubr.f32.gmra.mxu0 %v46
    %v204 = vpop.f32.mrf.mxu0
    %v205 = vadd.f32 0.0, %v204
    %v206 = vpop.f32.mrf.mxu0
    %v207 = vadd.f32 0.0, %v206
    %208 = vmatprep.mubr.f32.mxu0 %v49
    %209 = vmatmul.mubr.f32.gmra.mxu0 %v48
    %v210 = vpop.f32.mrf.mxu0
    %v211 = vadd.f32 0.0, %v210
    %v212 = vpop.f32.mrf.mxu0
    %v213 = vadd.f32 0.0, %v212
    %214 = vmatprep.mubr.f32.mxu0 %v51
    %215 = vmatmul.mubr.f32.gmra.mxu0 %v50
    %v216 = vpop.f32.mrf.mxu0
    %v217 = vadd.f32 0.0, %v216
    %v218 = vpop.f32.mrf.mxu0
    %v219 = vadd.f32 0.0, %v218
    %220 = vmatprep.mubr.f32.mxu0 %v53
    %221 = vmatmul.mubr.f32.gmra.mxu0 %v52
    %v222 = vpop.f32.mrf.mxu0
    %v223 = vadd.f32 0.0, %v222
    %v224 = vpop.f32.mrf.mxu0
    %v225 = vadd.f32 0.0, %v224
    %226 = vmatprep.mubr.f32.mxu0 %v55
    %227 = vmatmul.mubr.f32.gmra.mxu0 %v54
    %v228 = vpop.f32.mrf.mxu0
    %v229 = vadd.f32 0.0, %v228
    %v230 = vpop.f32.mrf.mxu0
    %v231 = vadd.f32 0.0, %v230
    %232 = vdwg.mxu0
    %vm233 = vcmp.gt.f32.partialorder %v187, 0.0
    %vm234 = vcmp.gt.f32.partialorder %v189, 0.0
    %vm235 = vcmp.gt.f32.partialorder %v193, 0.0
    %vm236 = vcmp.gt.f32.partialorder %v195, 0.0
    %vm237 = vcmp.gt.f32.partialorder %v199, 0.0
    %vm238 = vcmp.gt.f32.partialorder %v201, 0.0
    %vm239 = vcmp.gt.f32.partialorder %v205, 0.0
    %vm240 = vcmp.gt.f32.partialorder %v207, 0.0
    %vm241 = vcmp.gt.f32.partialorder %v211, 0.0
    %vm242 = vcmp.gt.f32.partialorder %v213, 0.0
    %vm243 = vcmp.gt.f32.partialorder %v217, 0.0
    %vm244 = vcmp.gt.f32.partialorder %v219, 0.0
    %vm245 = vcmp.gt.f32.partialorder %v223, 0.0
    %vm246 = vcmp.gt.f32.partialorder %v225, 0.0
    %vm247 = vcmp.gt.f32.partialorder %v229, 0.0
    %vm248 = vcmp.gt.f32.partialorder %v231, 0.0
    %v249 = vmul.f32 %v187, 0.01
    %v250 = vmul.f32 %v189, 0.01
    %v251 = vmul.f32 %v193, 0.01
    %v252 = vmul.f32 %v195, 0.01
    %v253 = vmul.f32 %v199, 0.01
    %v254 = vmul.f32 %v201, 0.01
    %v255 = vmul.f32 %v205, 0.01
    %v256 = vmul.f32 %v207, 0.01
    %v257 = vmul.f32 %v211, 0.01
    %v258 = vmul.f32 %v213, 0.01
    %v259 = vmul.f32 %v217, 0.01
    %v260 = vmul.f32 %v219, 0.01
    %v261 = vmul.f32 %v223, 0.01
    %v262 = vmul.f32 %v225, 0.01
    %v263 = vmul.f32 %v229, 0.01
    %v264 = vmul.f32 %v231, 0.01
    %v265 = vsel %vm233, %v187, %v249
    %v266 = vsel %vm234, %v189, %v250
    %v267 = vsel %vm235, %v193, %v251
    %v268 = vsel %vm236, %v195, %v252
    %v269 = vsel %vm237, %v199, %v253
    %v270 = vsel %vm238, %v201, %v254
    %v271 = vsel %vm239, %v205, %v255
    %v272 = vsel %vm240, %v207, %v256
    %v273 = vsel %vm241, %v211, %v257
    %v274 = vsel %vm242, %v213, %v258
    %v275 = vsel %vm243, %v217, %v259
    %v276 = vsel %vm244, %v219, %v260
    %v277 = vsel %vm245, %v223, %v261
    %v278 = vsel %vm246, %v225, %v262
    %v279 = vsel %vm247, %v229, %v263
    %v280 = vsel %vm248, %v231, %v264
    %281 = vst [vmem:[#allocation7] sm:$0xff] %v265
    %282 = vst [vmem:[#allocation7 + $0x8] sm:$0xff] %v266
    %283 = vst [vmem:[#allocation7 + $0x10] sm:$0xff] %v267
    %284 = vst [vmem:[#allocation7 + $0x18] sm:$0xff] %v268
    %285 = vst [vmem:[#allocation7 + $0x20] sm:$0xff] %v269
    %286 = vst [vmem:[#allocation7 + $0x28] sm:$0xff] %v270
    %287 = vst [vmem:[#allocation7 + $0x30] sm:$0xff] %v271
    %288 = vst [vmem:[#allocation7 + $0x38] sm:$0xff] %v272
    %289 = vst [vmem:[#allocation7 + $0x40] sm:$0xff] %v273
    %290 = vst [vmem:[#allocation7 + $0x48] sm:$0xff] %v274
    %291 = vst [vmem:[#allocation7 + $0x50] sm:$0xff] %v275
    %292 = vst [vmem:[#allocation7 + $0x58] sm:$0xff] %v276
    %293 = vst [vmem:[#allocation7 + $0x60] sm:$0xff] %v277
    %294 = vst [vmem:[#allocation7 + $0x68] sm:$0xff] %v278
    %295 = vst [vmem:[#allocation7 + $0x70] sm:$0xff] %v279
    %296 = vst [vmem:[#allocation7 + $0x78] sm:$0xff] %v280
    // Predicated region
    $region18: #{tpu_custom_call.1} parent=1 // pred_check
      _
    $region19: #{tpu_custom_call.1} parent=1 // pred_check_branch
      %298 = sbr.rel (0) target = $region21
    $region20: #{tpu_custom_call.1} parent=1 // pred_region
      %s300 = ssub.s32 2048, 2048
      %301 = vsyncadd [#allocation4], %s300
      %s302 = sshll.u32 [#allocation7], 4
      %s303 = int_to_ptr.vmem [resolvable:$true] %s302
      %308 = dma.vmem_to_hbm [thread:$0]  %s303, 2048, %s2, [#allocation4], 256, 256, 16
    $region21: #{tpu_custom_call.1} parent=1 // pred_fallthru
      _
    // Predicated region
    $region22: #{tpu_custom_call.1} parent=1 // pred_check
      _
    $region23: #{tpu_custom_call.1} parent=1 // pred_check_branch
      %310 = sbr.rel (0) target = $region25
    $region24: #{tpu_custom_call.1} parent=1 // pred_region
      %311 = dma.done [#allocation4], 2048
    $region25: #{tpu_custom_call.1} parent=1 // pred_fallthru
      _
    %312 = vsyncpa [#allocation3], 1
    %313 = vsyncpa [#allocation6], 1
    %314 = vsyncpa [#allocation4], 1

</llo_original>
